<compile_context>
chip_gen: v7x
topology: tpu7x:2x2x1
jax: 0.10.0
libtpu: 0.0.40
codegen_flags: <defaults>
</compile_context>

<pallas_src>
import jax
import jax.numpy as jnp
from jax import lax
from jax.experimental import pallas as pl
from jax.experimental.pallas import tpu as pltpu


LANE_CHOICES = (1024, 512, 256, 128)     # lane-dense slab widths (multiples of 128)
TARGET_BLOCK_BYTES = 2 * 1024 * 1024     # ~2 MiB/block: DMA hidden, VMEM-safe everywhere
CHUNK_F32_VREGS = 8                      # in-kernel row-chunk ~ 8 f32 vregs per value


def _round_up(v, m):
    return -(-v // m) * m


def _native_bf16_ok():
    """True when the TensorCore VPU has native bf16 lanes (v6e / v7x).

    device_kind string check is used instead of pltpu.get_tpu_info() so that
    unknown / older chips safely fall back to the f32 compute path.
    """
    try:
        kind = jax.devices()[0].device_kind.lower()
    except Exception:
        return False
    return ("v6" in kind) or ("v7" in kind) or ("7x" in kind)


def _plan(total, itemsize):
    """Pick (rows, lane_w, block_rows, chunk_rows) for a lane-dense 2D slab."""
    for lane_w in LANE_CHOICES:
        if total % lane_w == 0:
            rows = total // lane_w
            break
    else:
        return None  # not a multiple of 128 -> caller splits off a tiny jnp tail

    # Row-chunk processed per inner-loop iteration (~8 f32 vregs per value).
    chunk_rows = max(8, (CHUNK_F32_VREGS * 8 * 128) // lane_w)   # multiple of 8

    if rows <= 2 * chunk_rows:
        # Small array: one block == the whole slab, a single in-kernel chunk.
        return rows, lane_w, rows, rows

    target_rows = max(chunk_rows,
                      (TARGET_BLOCK_BYTES // (lane_w * itemsize))
                      // chunk_rows * chunk_rows)
    # Even number of grid steps so the "parallel" axis splits evenly across
    # v7x's two TensorCores (no effect on single-TC v5e / v6e).
    steps = max(2, pl.cdiv(rows, target_rows))
    if steps % 2:
        steps += 1
    block_rows = min(_round_up(pl.cdiv(rows, steps), chunk_rows),
                     _round_up(rows, chunk_rows))
    return rows, lane_w, block_rows, chunk_rows


def _make_kernel(chunk_rows, compute_dtype):
    """ReLU-sum piecewise-linear activation over one (block_rows, lane_w) tile."""

    def kernel(breaks_ref, coeffs_ref, bias_ref, x_ref, o_ref):
        # breaks_ref, coeffs_ref : SMEM (num_points-1,) f32
        # bias_ref               : SMEM (1,) f32  (= y_vals[0])
        # x_ref / o_ref          : VMEM (block_rows, lane_w) tiles
        nseg = breaks_ref.shape[0]               # static (num_points - 1)
        block_rows, lane_w = x_ref.shape
        num_chunks = block_rows // chunk_rows    # wrapper guarantees divisibility
        cshape = (chunk_rows, lane_w)

        def process(r0):
            x = x_ref[pl.ds(r0, chunk_rows), :].astype(compute_dtype)
            # Two accumulators: halves the serial add chain; live set stays
            # well under the 64-vreg budget (x + 2 accs + per-knot temps).
            acc0 = jnp.broadcast_to(bias_ref[0], cshape).astype(compute_dtype)
            acc1 = jnp.zeros(cshape, compute_dtype)
            accs = [acc0, acc1]
            for i in range(nseg):                # unrolled: ~4 VPU ops / knot
                # Splat the f32 SMEM scalars, then vector-cast to the compute
                # dtype (avoids scalar f32->bf16 converts; identity for f32).
                b = jnp.broadcast_to(breaks_ref[i], cshape).astype(compute_dtype)
                c = jnp.broadcast_to(coeffs_ref[i], cshape).astype(compute_dtype)
                accs[i % 2] = accs[i % 2] + c * jnp.maximum(x - b, 0.0)
            o_ref[pl.ds(r0, chunk_rows), :] = (accs[0] + accs[1]).astype(o_ref.dtype)

        if num_chunks <= 1:
            process(0)
        else:
            # Rolled loop over row-chunks: bounds unrolled code size and vreg
            # pressure regardless of how large the pipelined block is.
            def body(ci, carry):
                process(pl.multiple_of(ci * chunk_rows, chunk_rows))
                return carry
            lax.fori_loop(0, num_chunks, body, 0)

    return kernel


def _run_slab(flat, total, breaks, coeffs, bias, out_dtype, compute_dtype):
    """Run the kernel over a flat array whose length is a multiple of 128."""
    itemsize = max(jnp.dtype(out_dtype).itemsize, 4)
    rows, lane_w, block_rows, chunk_rows = _plan(total, itemsize)
    assert block_rows % chunk_rows == 0
    x2d = flat.reshape(rows, lane_w)
    grid = (pl.cdiv(rows, block_rows),)

    out2d = pl.pallas_call(
        _make_kernel(chunk_rows, compute_dtype),
        out_shape=jax.ShapeDtypeStruct((rows, lane_w), out_dtype),
        grid_spec=pl.GridSpec(
            grid=grid,
            in_specs=[
                pl.BlockSpec(memory_space=pltpu.SMEM),   # breaks  (n-1,)
                pl.BlockSpec(memory_space=pltpu.SMEM),   # coeffs  (n-1,)
                pl.BlockSpec(memory_space=pltpu.SMEM),   # bias    (1,)
                pl.BlockSpec((block_rows, lane_w), lambda i: (i, 0)),
            ],
            out_specs=pl.BlockSpec((block_rows, lane_w), lambda i: (i, 0)),
        ),
        compiler_params=pltpu.CompilerParams(
            dimension_semantics=("parallel",),
            vmem_limit_bytes=32 * 1024 * 1024,
        ),
    )(breaks, coeffs, bias, x2d)
    return out2d.reshape(-1)


def pfla_forward(x, x_vals, y_vals):
    """Apply the piecewise-fully-learnable activation elementwise to x (any shape)."""
    orig_shape = x.shape
    orig_dtype = x.dtype
    total = int(x.size)
    if total == 0:
        return x

    # Precompute ReLU-sum coefficients once (tiny, outside the kernel).
    xv = x_vals.astype(jnp.float32)
    yv = y_vals.astype(jnp.float32)
    slopes = (yv[1:] - yv[:-1]) / (xv[1:] - xv[:-1])                  # (n-1,)
    coeffs = jnp.concatenate([slopes[:1], slopes[1:] - slopes[:-1]])  # (n-1,)
    breaks = xv[:-1]                                                  # (n-1,)
    bias = yv[:1]                                                     # (1,)

    compute_dtype = (jnp.bfloat16
                     if jnp.dtype(orig_dtype) == jnp.dtype(jnp.bfloat16)
                     and _native_bf16_ok()
                     else jnp.float32)

    flat = x.reshape(-1)
    main_n = (total // 128) * 128

    if main_n == total:
        out = _run_slab(flat, total, breaks, coeffs, bias, orig_dtype, compute_dtype)
        return out.reshape(orig_shape)

    # Ragged tail (< 128 elems): kernel on the 128-aligned prefix, tail in jnp.
    tail_f32 = flat[main_n:].astype(jnp.float32)
    tail = (bias[0] + jnp.sum(coeffs * jnp.maximum(tail_f32[:, None] - breaks, 0.0),
                              axis=-1)).astype(orig_dtype)
    if main_n == 0:
        return tail.reshape(orig_shape)
    head = _run_slab(flat[:main_n], main_n, breaks, coeffs, bias,
                     orig_dtype, compute_dtype)
    return jnp.concatenate([head, tail]).reshape(orig_shape)


def init_params(num_points=30, left_bound=-10.0, right_bound=10.0):
    """Deterministic parameter init matching the PyTorch __init__."""
    xv = jnp.linspace(left_bound, right_bound, num_points + 2,
                      dtype=jnp.float32)[1:-1]
    # nn.GELU() default is the exact (erf-based) GELU.
    yv = jax.nn.gelu(xv, approximate=False).astype(jnp.float32)
    return xv, yv


def pfla_reference(x, x_vals, y_vals):
    """Pure-JAX reference reproducing the PyTorch where-cascade forward exactly."""
    n = x_vals.shape[0]
    result = jnp.full_like(x, y_vals[0])
    for i in range(n - 1):
        slope = (y_vals[i + 1] - y_vals[i]) / (x_vals[i + 1] - x_vals[i])
        intercept = y_vals[i] - slope * x_vals[i]
        segment = slope * x + intercept
        result = jnp.where((x >= x_vals[i]) & (x < x_vals[i + 1]),
                           segment, result)
    slope = (y_vals[-1] - y_vals[-2]) / (x_vals[-1] - x_vals[-2])
    intercept = y_vals[-1] - slope * x_vals[-1]
    segment = slope * x + intercept
    result = jnp.where(x >= x_vals[-1], segment, result)
    return result


if __name__ == "__main__":
    # config.pfla_num_points=30, pfla_left_bound=-10, pfla_right_bound=10
    NUM_POINTS = 30
    LEFT, RIGHT = -10.0, 10.0
    x_vals, y_vals = init_params(NUM_POINTS, LEFT, RIGHT)

    key = jax.random.PRNGKey(0)
    cases = [
        ((2, 4, 16, 16), jnp.float32),   # 2048 elems: single-block slab
        ((17, 32, 64), jnp.float32),     # 34816 elems: 2-step grid + ragged last block
        ((2, 3, 5, 7), jnp.float32),     # 210 elems: 128-aligned prefix + jnp tail
        ((4, 8, 32, 32), jnp.bfloat16),  # 32768 elems: bf16 path (native on v6e/v7x)
    ]
    for ci, (shape, dtype) in enumerate(cases):
        key, sub = jax.random.split(key)
        x = (jax.random.normal(sub, shape, dtype=jnp.float32) * 4.0).astype(dtype)
        out = jax.block_until_ready(pfla_forward(x, x_vals, y_vals))
        ref = pfla_reference(x.astype(jnp.float32), x_vals, y_vals)
        assert out.shape == x.shape and out.dtype == x.dtype, f"shape/dtype case {ci}"
        if jnp.dtype(dtype) == jnp.dtype(jnp.bfloat16):
            # bf16 knot accumulation drifts at the ~1e-2 level; accepted per review.
            ok = jnp.allclose(out.astype(jnp.float32), ref, atol=1e-1, rtol=5e-2)
        else:
            ok = jnp.allclose(out, ref, atol=1e-4, rtol=1e-4)
        assert ok, f"mismatch case {ci}"

    print("KERNEL_OK")
</pallas_src>

<mosaic_0001>
module attributes {stable_mosaic.version = 11 : i64} {
  func.func @kernel(%arg0: i32, %arg1: memref<29xf32, #tpu.memory_space<smem>>, %arg2: memref<29xf32, #tpu.memory_space<smem>>, %arg3: memref<1xf32, #tpu.memory_space<smem>>, %arg4: memref<2x1024xf32, #tpu.memory_space<vmem>>, %arg5: memref<2x1024xf32, #tpu.memory_space<vmem>>) attributes {dimension_semantics = [#tpu.dimension_semantics<parallel>], iteration_bounds = array<i64: 1>, scalar_prefetch = 0 : i64, scratch_operands = 0 : i64, tpu.core_type = #tpu.core_type<tc>, window_params = [{transform_indices = @transform_0, window_bounds = array<i64: 29>}, {transform_indices = @transform_1, window_bounds = array<i64: 29>}, {transform_indices = @transform_2, window_bounds = array<i64: 1>}, {transform_indices = @transform_3, window_bounds = array<i64: 2, 1024>}, {transform_indices = @transform_4, window_bounds = array<i64: 2, 1024>}]} {
    %c0 = arith.constant 0 : index
    %c0_0 = arith.constant 0 : index
    %0 = vector.load %arg4[%c0, %c0_0] : memref<2x1024xf32, #tpu.memory_space<vmem>>, vector<2x1024xf32>
    %c0_1 = arith.constant 0 : index
    %1 = memref.load %arg3[%c0_1] : memref<1xf32, #tpu.memory_space<smem>>
    %2 = vector.broadcast %1 : f32 to vector<2x1024xf32>
    %cst = arith.constant 0.000000e+00 : f32
    %3 = vector.broadcast %cst : f32 to vector<2x1024xf32>
    %c0_2 = arith.constant 0 : index
    %4 = memref.load %arg1[%c0_2] : memref<29xf32, #tpu.memory_space<smem>>
    %5 = vector.broadcast %4 : f32 to vector<2x1024xf32>
    %c0_3 = arith.constant 0 : index
    %6 = memref.load %arg2[%c0_3] : memref<29xf32, #tpu.memory_space<smem>>
    %7 = vector.broadcast %6 : f32 to vector<2x1024xf32>
    %8 = arith.subf %0, %5 : vector<2x1024xf32>
    %cst_4 = arith.constant 0.000000e+00 : f32
    %9 = vector.broadcast %cst_4 : f32 to vector<2x1024xf32>
    %10 = arith.maximumf %8, %9 : vector<2x1024xf32>
    %11 = arith.mulf %7, %10 : vector<2x1024xf32>
    %12 = arith.addf %2, %11 : vector<2x1024xf32>
    %c1 = arith.constant 1 : index
    %13 = memref.load %arg1[%c1] : memref<29xf32, #tpu.memory_space<smem>>
    %14 = vector.broadcast %13 : f32 to vector<2x1024xf32>
    %c1_5 = arith.constant 1 : index
    %15 = memref.load %arg2[%c1_5] : memref<29xf32, #tpu.memory_space<smem>>
    %16 = vector.broadcast %15 : f32 to vector<2x1024xf32>
    %17 = arith.subf %0, %14 : vector<2x1024xf32>
    %cst_6 = arith.constant 0.000000e+00 : f32
    %18 = vector.broadcast %cst_6 : f32 to vector<2x1024xf32>
    %19 = arith.maximumf %17, %18 : vector<2x1024xf32>
    %20 = arith.mulf %16, %19 : vector<2x1024xf32>
    %21 = arith.addf %3, %20 : vector<2x1024xf32>
    %c2 = arith.constant 2 : index
    %22 = memref.load %arg1[%c2] : memref<29xf32, #tpu.memory_space<smem>>
    %23 = vector.broadcast %22 : f32 to vector<2x1024xf32>
    %c2_7 = arith.constant 2 : index
    %24 = memref.load %arg2[%c2_7] : memref<29xf32, #tpu.memory_space<smem>>
    %25 = vector.broadcast %24 : f32 to vector<2x1024xf32>
    %26 = arith.subf %0, %23 : vector<2x1024xf32>
    %cst_8 = arith.constant 0.000000e+00 : f32
    %27 = vector.broadcast %cst_8 : f32 to vector<2x1024xf32>
    %28 = arith.maximumf %26, %27 : vector<2x1024xf32>
    %29 = arith.mulf %25, %28 : vector<2x1024xf32>
    %30 = arith.addf %12, %29 : vector<2x1024xf32>
    %c3 = arith.constant 3 : index
    %31 = memref.load %arg1[%c3] : memref<29xf32, #tpu.memory_space<smem>>
    %32 = vector.broadcast %31 : f32 to vector<2x1024xf32>
    %c3_9 = arith.constant 3 : index
    %33 = memref.load %arg2[%c3_9] : memref<29xf32, #tpu.memory_space<smem>>
    %34 = vector.broadcast %33 : f32 to vector<2x1024xf32>
    %35 = arith.subf %0, %32 : vector<2x1024xf32>
    %cst_10 = arith.constant 0.000000e+00 : f32
    %36 = vector.broadcast %cst_10 : f32 to vector<2x1024xf32>
    %37 = arith.maximumf %35, %36 : vector<2x1024xf32>
    %38 = arith.mulf %34, %37 : vector<2x1024xf32>
    %39 = arith.addf %21, %38 : vector<2x1024xf32>
    %c4 = arith.constant 4 : index
    %40 = memref.load %arg1[%c4] : memref<29xf32, #tpu.memory_space<smem>>
    %41 = vector.broadcast %40 : f32 to vector<2x1024xf32>
    %c4_11 = arith.constant 4 : index
    %42 = memref.load %arg2[%c4_11] : memref<29xf32, #tpu.memory_space<smem>>
    %43 = vector.broadcast %42 : f32 to vector<2x1024xf32>
    %44 = arith.subf %0, %41 : vector<2x1024xf32>
    %cst_12 = arith.constant 0.000000e+00 : f32
    %45 = vector.broadcast %cst_12 : f32 to vector<2x1024xf32>
    %46 = arith.maximumf %44, %45 : vector<2x1024xf32>
    %47 = arith.mulf %43, %46 : vector<2x1024xf32>
    %48 = arith.addf %30, %47 : vector<2x1024xf32>
    %c5 = arith.constant 5 : index
    %49 = memref.load %arg1[%c5] : memref<29xf32, #tpu.memory_space<smem>>
    %50 = vector.broadcast %49 : f32 to vector<2x1024xf32>
    %c5_13 = arith.constant 5 : index
    %51 = memref.load %arg2[%c5_13] : memref<29xf32, #tpu.memory_space<smem>>
    %52 = vector.broadcast %51 : f32 to vector<2x1024xf32>
    %53 = arith.subf %0, %50 : vector<2x1024xf32>
    %cst_14 = arith.constant 0.000000e+00 : f32
    %54 = vector.broadcast %cst_14 : f32 to vector<2x1024xf32>
    %55 = arith.maximumf %53, %54 : vector<2x1024xf32>
    %56 = arith.mulf %52, %55 : vector<2x1024xf32>
    %57 = arith.addf %39, %56 : vector<2x1024xf32>
    %c6 = arith.constant 6 : index
    %58 = memref.load %arg1[%c6] : memref<29xf32, #tpu.memory_space<smem>>
    %59 = vector.broadcast %58 : f32 to vector<2x1024xf32>
    %c6_15 = arith.constant 6 : index
    %60 = memref.load %arg2[%c6_15] : memref<29xf32, #tpu.memory_space<smem>>
    %61 = vector.broadcast %60 : f32 to vector<2x1024xf32>
    %62 = arith.subf %0, %59 : vector<2x1024xf32>
    %cst_16 = arith.constant 0.000000e+00 : f32
    %63 = vector.broadcast %cst_16 : f32 to vector<2x1024xf32>
    %64 = arith.maximumf %62, %63 : vector<2x1024xf32>
    %65 = arith.mulf %61, %64 : vector<2x1024xf32>
    %66 = arith.addf %48, %65 : vector<2x1024xf32>
    %c7 = arith.constant 7 : index
    %67 = memref.load %arg1[%c7] : memref<29xf32, #tpu.memory_space<smem>>
    %68 = vector.broadcast %67 : f32 to vector<2x1024xf32>
    %c7_17 = arith.constant 7 : index
    %69 = memref.load %arg2[%c7_17] : memref<29xf32, #tpu.memory_space<smem>>
    %70 = vector.broadcast %69 : f32 to vector<2x1024xf32>
    %71 = arith.subf %0, %68 : vector<2x1024xf32>
    %cst_18 = arith.constant 0.000000e+00 : f32
    %72 = vector.broadcast %cst_18 : f32 to vector<2x1024xf32>
    %73 = arith.maximumf %71, %72 : vector<2x1024xf32>
    %74 = arith.mulf %70, %73 : vector<2x1024xf32>
    %75 = arith.addf %57, %74 : vector<2x1024xf32>
    %c8 = arith.constant 8 : index
    %76 = memref.load %arg1[%c8] : memref<29xf32, #tpu.memory_space<smem>>
    %77 = vector.broadcast %76 : f32 to vector<2x1024xf32>
    %c8_19 = arith.constant 8 : index
    %78 = memref.load %arg2[%c8_19] : memref<29xf32, #tpu.memory_space<smem>>
    %79 = vector.broadcast %78 : f32 to vector<2x1024xf32>
    %80 = arith.subf %0, %77 : vector<2x1024xf32>
    %cst_20 = arith.constant 0.000000e+00 : f32
    %81 = vector.broadcast %cst_20 : f32 to vector<2x1024xf32>
    %82 = arith.maximumf %80, %81 : vector<2x1024xf32>
    %83 = arith.mulf %79, %82 : vector<2x1024xf32>
    %84 = arith.addf %66, %83 : vector<2x1024xf32>
    %c9 = arith.constant 9 : index
    %85 = memref.load %arg1[%c9] : memref<29xf32, #tpu.memory_space<smem>>
    %86 = vector.broadcast %85 : f32 to vector<2x1024xf32>
    %c9_21 = arith.constant 9 : index
    %87 = memref.load %arg2[%c9_21] : memref<29xf32, #tpu.memory_space<smem>>
    %88 = vector.broadcast %87 : f32 to vector<2x1024xf32>
    %89 = arith.subf %0, %86 : vector<2x1024xf32>
    %cst_22 = arith.constant 0.000000e+00 : f32
    %90 = vector.broadcast %cst_22 : f32 to vector<2x1024xf32>
    %91 = arith.maximumf %89, %90 : vector<2x1024xf32>
    %92 = arith.mulf %88, %91 : vector<2x1024xf32>
    %93 = arith.addf %75, %92 : vector<2x1024xf32>
    %c10 = arith.constant 10 : index
    %94 = memref.load %arg1[%c10] : memref<29xf32, #tpu.memory_space<smem>>
    %95 = vector.broadcast %94 : f32 to vector<2x1024xf32>
    %c10_23 = arith.constant 10 : index
    %96 = memref.load %arg2[%c10_23] : memref<29xf32, #tpu.memory_space<smem>>
    %97 = vector.broadcast %96 : f32 to vector<2x1024xf32>
    %98 = arith.subf %0, %95 : vector<2x1024xf32>
    %cst_24 = arith.constant 0.000000e+00 : f32
    %99 = vector.broadcast %cst_24 : f32 to vector<2x1024xf32>
    %100 = arith.maximumf %98, %99 : vector<2x1024xf32>
    %101 = arith.mulf %97, %100 : vector<2x1024xf32>
    %102 = arith.addf %84, %101 : vector<2x1024xf32>
    %c11 = arith.constant 11 : index
    %103 = memref.load %arg1[%c11] : memref<29xf32, #tpu.memory_space<smem>>
    %104 = vector.broadcast %103 : f32 to vector<2x1024xf32>
    %c11_25 = arith.constant 11 : index
    %105 = memref.load %arg2[%c11_25] : memref<29xf32, #tpu.memory_space<smem>>
    %106 = vector.broadcast %105 : f32 to vector<2x1024xf32>
    %107 = arith.subf %0, %104 : vector<2x1024xf32>
    %cst_26 = arith.constant 0.000000e+00 : f32
    %108 = vector.broadcast %cst_26 : f32 to vector<2x1024xf32>
    %109 = arith.maximumf %107, %108 : vector<2x1024xf32>
    %110 = arith.mulf %106, %109 : vector<2x1024xf32>
    %111 = arith.addf %93, %110 : vector<2x1024xf32>
    %c12 = arith.constant 12 : index
    %112 = memref.load %arg1[%c12] : memref<29xf32, #tpu.memory_space<smem>>
    %113 = vector.broadcast %112 : f32 to vector<2x1024xf32>
    %c12_27 = arith.constant 12 : index
    %114 = memref.load %arg2[%c12_27] : memref<29xf32, #tpu.memory_space<smem>>
    %115 = vector.broadcast %114 : f32 to vector<2x1024xf32>
    %116 = arith.subf %0, %113 : vector<2x1024xf32>
    %cst_28 = arith.constant 0.000000e+00 : f32
    %117 = vector.broadcast %cst_28 : f32 to vector<2x1024xf32>
    %118 = arith.maximumf %116, %117 : vector<2x1024xf32>
    %119 = arith.mulf %115, %118 : vector<2x1024xf32>
    %120 = arith.addf %102, %119 : vector<2x1024xf32>
    %c13 = arith.constant 13 : index
    %121 = memref.load %arg1[%c13] : memref<29xf32, #tpu.memory_space<smem>>
    %122 = vector.broadcast %121 : f32 to vector<2x1024xf32>
    %c13_29 = arith.constant 13 : index
    %123 = memref.load %arg2[%c13_29] : memref<29xf32, #tpu.memory_space<smem>>
    %124 = vector.broadcast %123 : f32 to vector<2x1024xf32>
    %125 = arith.subf %0, %122 : vector<2x1024xf32>
    %cst_30 = arith.constant 0.000000e+00 : f32
    %126 = vector.broadcast %cst_30 : f32 to vector<2x1024xf32>
    %127 = arith.maximumf %125, %126 : vector<2x1024xf32>
    %128 = arith.mulf %124, %127 : vector<2x1024xf32>
    %129 = arith.addf %111, %128 : vector<2x1024xf32>
    %c14 = arith.constant 14 : index
    %130 = memref.load %arg1[%c14] : memref<29xf32, #tpu.memory_space<smem>>
    %131 = vector.broadcast %130 : f32 to vector<2x1024xf32>
    %c14_31 = arith.constant 14 : index
    %132 = memref.load %arg2[%c14_31] : memref<29xf32, #tpu.memory_space<smem>>
    %133 = vector.broadcast %132 : f32 to vector<2x1024xf32>
    %134 = arith.subf %0, %131 : vector<2x1024xf32>
    %cst_32 = arith.constant 0.000000e+00 : f32
    %135 = vector.broadcast %cst_32 : f32 to vector<2x1024xf32>
    %136 = arith.maximumf %134, %135 : vector<2x1024xf32>
    %137 = arith.mulf %133, %136 : vector<2x1024xf32>
    %138 = arith.addf %120, %137 : vector<2x1024xf32>
    %c15 = arith.constant 15 : index
    %139 = memref.load %arg1[%c15] : memref<29xf32, #tpu.memory_space<smem>>
    %140 = vector.broadcast %139 : f32 to vector<2x1024xf32>
    %c15_33 = arith.constant 15 : index
    %141 = memref.load %arg2[%c15_33] : memref<29xf32, #tpu.memory_space<smem>>
    %142 = vector.broadcast %141 : f32 to vector<2x1024xf32>
    %143 = arith.subf %0, %140 : vector<2x1024xf32>
    %cst_34 = arith.constant 0.000000e+00 : f32
    %144 = vector.broadcast %cst_34 : f32 to vector<2x1024xf32>
    %145 = arith.maximumf %143, %144 : vector<2x1024xf32>
    %146 = arith.mulf %142, %145 : vector<2x1024xf32>
    %147 = arith.addf %129, %146 : vector<2x1024xf32>
    %c16 = arith.constant 16 : index
    %148 = memref.load %arg1[%c16] : memref<29xf32, #tpu.memory_space<smem>>
    %149 = vector.broadcast %148 : f32 to vector<2x1024xf32>
    %c16_35 = arith.constant 16 : index
    %150 = memref.load %arg2[%c16_35] : memref<29xf32, #tpu.memory_space<smem>>
    %151 = vector.broadcast %150 : f32 to vector<2x1024xf32>
    %152 = arith.subf %0, %149 : vector<2x1024xf32>
    %cst_36 = arith.constant 0.000000e+00 : f32
    %153 = vector.broadcast %cst_36 : f32 to vector<2x1024xf32>
    %154 = arith.maximumf %152, %153 : vector<2x1024xf32>
    %155 = arith.mulf %151, %154 : vector<2x1024xf32>
    %156 = arith.addf %138, %155 : vector<2x1024xf32>
    %c17 = arith.constant 17 : index
    %157 = memref.load %arg1[%c17] : memref<29xf32, #tpu.memory_space<smem>>
    %158 = vector.broadcast %157 : f32 to vector<2x1024xf32>
    %c17_37 = arith.constant 17 : index
    %159 = memref.load %arg2[%c17_37] : memref<29xf32, #tpu.memory_space<smem>>
    %160 = vector.broadcast %159 : f32 to vector<2x1024xf32>
    %161 = arith.subf %0, %158 : vector<2x1024xf32>
    %cst_38 = arith.constant 0.000000e+00 : f32
    %162 = vector.broadcast %cst_38 : f32 to vector<2x1024xf32>
    %163 = arith.maximumf %161, %162 : vector<2x1024xf32>
    %164 = arith.mulf %160, %163 : vector<2x1024xf32>
    %165 = arith.addf %147, %164 : vector<2x1024xf32>
    %c18 = arith.constant 18 : index
    %166 = memref.load %arg1[%c18] : memref<29xf32, #tpu.memory_space<smem>>
    %167 = vector.broadcast %166 : f32 to vector<2x1024xf32>
    %c18_39 = arith.constant 18 : index
    %168 = memref.load %arg2[%c18_39] : memref<29xf32, #tpu.memory_space<smem>>
    %169 = vector.broadcast %168 : f32 to vector<2x1024xf32>
    %170 = arith.subf %0, %167 : vector<2x1024xf32>
    %cst_40 = arith.constant 0.000000e+00 : f32
    %171 = vector.broadcast %cst_40 : f32 to vector<2x1024xf32>
    %172 = arith.maximumf %170, %171 : vector<2x1024xf32>
    %173 = arith.mulf %169, %172 : vector<2x1024xf32>
    %174 = arith.addf %156, %173 : vector<2x1024xf32>
    %c19 = arith.constant 19 : index
    %175 = memref.load %arg1[%c19] : memref<29xf32, #tpu.memory_space<smem>>
    %176 = vector.broadcast %175 : f32 to vector<2x1024xf32>
    %c19_41 = arith.constant 19 : index
    %177 = memref.load %arg2[%c19_41] : memref<29xf32, #tpu.memory_space<smem>>
    %178 = vector.broadcast %177 : f32 to vector<2x1024xf32>
    %179 = arith.subf %0, %176 : vector<2x1024xf32>
    %cst_42 = arith.constant 0.000000e+00 : f32
    %180 = vector.broadcast %cst_42 : f32 to vector<2x1024xf32>
    %181 = arith.maximumf %179, %180 : vector<2x1024xf32>
    %182 = arith.mulf %178, %181 : vector<2x1024xf32>
    %183 = arith.addf %165, %182 : vector<2x1024xf32>
    %c20 = arith.constant 20 : index
    %184 = memref.load %arg1[%c20] : memref<29xf32, #tpu.memory_space<smem>>
    %185 = vector.broadcast %184 : f32 to vector<2x1024xf32>
    %c20_43 = arith.constant 20 : index
    %186 = memref.load %arg2[%c20_43] : memref<29xf32, #tpu.memory_space<smem>>
    %187 = vector.broadcast %186 : f32 to vector<2x1024xf32>
    %188 = arith.subf %0, %185 : vector<2x1024xf32>
    %cst_44 = arith.constant 0.000000e+00 : f32
    %189 = vector.broadcast %cst_44 : f32 to vector<2x1024xf32>
    %190 = arith.maximumf %188, %189 : vector<2x1024xf32>
    %191 = arith.mulf %187, %190 : vector<2x1024xf32>
    %192 = arith.addf %174, %191 : vector<2x1024xf32>
    %c21 = arith.constant 21 : index
    %193 = memref.load %arg1[%c21] : memref<29xf32, #tpu.memory_space<smem>>
    %194 = vector.broadcast %193 : f32 to vector<2x1024xf32>
    %c21_45 = arith.constant 21 : index
    %195 = memref.load %arg2[%c21_45] : memref<29xf32, #tpu.memory_space<smem>>
    %196 = vector.broadcast %195 : f32 to vector<2x1024xf32>
    %197 = arith.subf %0, %194 : vector<2x1024xf32>
    %cst_46 = arith.constant 0.000000e+00 : f32
    %198 = vector.broadcast %cst_46 : f32 to vector<2x1024xf32>
    %199 = arith.maximumf %197, %198 : vector<2x1024xf32>
    %200 = arith.mulf %196, %199 : vector<2x1024xf32>
    %201 = arith.addf %183, %200 : vector<2x1024xf32>
    %c22 = arith.constant 22 : index
    %202 = memref.load %arg1[%c22] : memref<29xf32, #tpu.memory_space<smem>>
    %203 = vector.broadcast %202 : f32 to vector<2x1024xf32>
    %c22_47 = arith.constant 22 : index
    %204 = memref.load %arg2[%c22_47] : memref<29xf32, #tpu.memory_space<smem>>
    %205 = vector.broadcast %204 : f32 to vector<2x1024xf32>
    %206 = arith.subf %0, %203 : vector<2x1024xf32>
    %cst_48 = arith.constant 0.000000e+00 : f32
    %207 = vector.broadcast %cst_48 : f32 to vector<2x1024xf32>
    %208 = arith.maximumf %206, %207 : vector<2x1024xf32>
    %209 = arith.mulf %205, %208 : vector<2x1024xf32>
    %210 = arith.addf %192, %209 : vector<2x1024xf32>
    %c23 = arith.constant 23 : index
    %211 = memref.load %arg1[%c23] : memref<29xf32, #tpu.memory_space<smem>>
    %212 = vector.broadcast %211 : f32 to vector<2x1024xf32>
    %c23_49 = arith.constant 23 : index
    %213 = memref.load %arg2[%c23_49] : memref<29xf32, #tpu.memory_space<smem>>
    %214 = vector.broadcast %213 : f32 to vector<2x1024xf32>
    %215 = arith.subf %0, %212 : vector<2x1024xf32>
    %cst_50 = arith.constant 0.000000e+00 : f32
    %216 = vector.broadcast %cst_50 : f32 to vector<2x1024xf32>
    %217 = arith.maximumf %215, %216 : vector<2x1024xf32>
    %218 = arith.mulf %214, %217 : vector<2x1024xf32>
    %219 = arith.addf %201, %218 : vector<2x1024xf32>
    %c24 = arith.constant 24 : index
    %220 = memref.load %arg1[%c24] : memref<29xf32, #tpu.memory_space<smem>>
    %221 = vector.broadcast %220 : f32 to vector<2x1024xf32>
    %c24_51 = arith.constant 24 : index
    %222 = memref.load %arg2[%c24_51] : memref<29xf32, #tpu.memory_space<smem>>
    %223 = vector.broadcast %222 : f32 to vector<2x1024xf32>
    %224 = arith.subf %0, %221 : vector<2x1024xf32>
    %cst_52 = arith.constant 0.000000e+00 : f32
    %225 = vector.broadcast %cst_52 : f32 to vector<2x1024xf32>
    %226 = arith.maximumf %224, %225 : vector<2x1024xf32>
    %227 = arith.mulf %223, %226 : vector<2x1024xf32>
    %228 = arith.addf %210, %227 : vector<2x1024xf32>
    %c25 = arith.constant 25 : index
    %229 = memref.load %arg1[%c25] : memref<29xf32, #tpu.memory_space<smem>>
    %230 = vector.broadcast %229 : f32 to vector<2x1024xf32>
    %c25_53 = arith.constant 25 : index
    %231 = memref.load %arg2[%c25_53] : memref<29xf32, #tpu.memory_space<smem>>
    %232 = vector.broadcast %231 : f32 to vector<2x1024xf32>
    %233 = arith.subf %0, %230 : vector<2x1024xf32>
    %cst_54 = arith.constant 0.000000e+00 : f32
    %234 = vector.broadcast %cst_54 : f32 to vector<2x1024xf32>
    %235 = arith.maximumf %233, %234 : vector<2x1024xf32>
    %236 = arith.mulf %232, %235 : vector<2x1024xf32>
    %237 = arith.addf %219, %236 : vector<2x1024xf32>
    %c26 = arith.constant 26 : index
    %238 = memref.load %arg1[%c26] : memref<29xf32, #tpu.memory_space<smem>>
    %239 = vector.broadcast %238 : f32 to vector<2x1024xf32>
    %c26_55 = arith.constant 26 : index
    %240 = memref.load %arg2[%c26_55] : memref<29xf32, #tpu.memory_space<smem>>
    %241 = vector.broadcast %240 : f32 to vector<2x1024xf32>
    %242 = arith.subf %0, %239 : vector<2x1024xf32>
    %cst_56 = arith.constant 0.000000e+00 : f32
    %243 = vector.broadcast %cst_56 : f32 to vector<2x1024xf32>
    %244 = arith.maximumf %242, %243 : vector<2x1024xf32>
    %245 = arith.mulf %241, %244 : vector<2x1024xf32>
    %246 = arith.addf %228, %245 : vector<2x1024xf32>
    %c27 = arith.constant 27 : index
    %247 = memref.load %arg1[%c27] : memref<29xf32, #tpu.memory_space<smem>>
    %248 = vector.broadcast %247 : f32 to vector<2x1024xf32>
    %c27_57 = arith.constant 27 : index
    %249 = memref.load %arg2[%c27_57] : memref<29xf32, #tpu.memory_space<smem>>
    %250 = vector.broadcast %249 : f32 to vector<2x1024xf32>
    %251 = arith.subf %0, %248 : vector<2x1024xf32>
    %cst_58 = arith.constant 0.000000e+00 : f32
    %252 = vector.broadcast %cst_58 : f32 to vector<2x1024xf32>
    %253 = arith.maximumf %251, %252 : vector<2x1024xf32>
    %254 = arith.mulf %250, %253 : vector<2x1024xf32>
    %255 = arith.addf %237, %254 : vector<2x1024xf32>
    %c28 = arith.constant 28 : index
    %256 = memref.load %arg1[%c28] : memref<29xf32, #tpu.memory_space<smem>>
    %257 = vector.broadcast %256 : f32 to vector<2x1024xf32>
    %c28_59 = arith.constant 28 : index
    %258 = memref.load %arg2[%c28_59] : memref<29xf32, #tpu.memory_space<smem>>
    %259 = vector.broadcast %258 : f32 to vector<2x1024xf32>
    %260 = arith.subf %0, %257 : vector<2x1024xf32>
    %cst_60 = arith.constant 0.000000e+00 : f32
    %261 = vector.broadcast %cst_60 : f32 to vector<2x1024xf32>
    %262 = arith.maximumf %260, %261 : vector<2x1024xf32>
    %263 = arith.mulf %259, %262 : vector<2x1024xf32>
    %264 = arith.addf %246, %263 : vector<2x1024xf32>
    %265 = arith.addf %264, %255 : vector<2x1024xf32>
    %c0_61 = arith.constant 0 : index
    %c0_62 = arith.constant 0 : index
    %266 = vector.load %arg5[%c0_61, %c0_62] : memref<2x1024xf32, #tpu.memory_space<vmem>>, vector<2x1024xf32>
    tpu.vector_store %arg5[%c0_61, %c0_62], %265 {strides = array<i32>} : memref<2x1024xf32, #tpu.memory_space<vmem>>, vector<2x1024xf32>,
    return
  }
  func.func @transform_0(%arg0: i32) -> i32 {
    %c0_i32 = arith.constant 0 : i32
    %c0_i32_0 = arith.constant 0 : i32
    return %c0_i32 : i32
  }
  func.func @transform_1(%arg0: i32) -> i32 {
    %c0_i32 = arith.constant 0 : i32
    %c0_i32_0 = arith.constant 0 : i32
    return %c0_i32 : i32
  }
  func.func @transform_2(%arg0: i32) -> i32 {
    %c0_i32 = arith.constant 0 : i32
    %c0_i32_0 = arith.constant 0 : i32
    return %c0_i32 : i32
  }
  func.func @transform_3(%arg0: i32) -> (i32, i32) {
    %c0_i32 = arith.constant 0 : i32
    %c0_i32_0 = arith.constant 0 : i32
    return %arg0, %c0_i32 : i32, i32
  }
  func.func @transform_4(%arg0: i32) -> (i32, i32) {
    %c0_i32 = arith.constant 0 : i32
    %c0_i32_0 = arith.constant 0 : i32
    return %arg0, %c0_i32 : i32, i32
  }
}

</mosaic_0001>

<llo_original>
// kernel: tpu_custom_call.1
$region0: #{tpu_custom_call.1}
  #allocation0 [shape = 'u32[]', space=smem, size = 0x4, offset = 0x4, fixed_abs, tag = 'smem constant byte address 0x4 - core index']
  #allocation1 [shape = 'u32[144,128]{1,0:T(1,128)}', space=vmem, size = 0x12000, scoped, tag = 'internal scratch']
  #allocation2 [shape = 'f32[1]{0:T(128)S(6)}', space=smem, size = 0x200, scoped, tag = 'scoped memory for tpu_custom_call.1']
  %s0 = inlined_call_operand.vmem [shape: f32[29], index: 0, kind: input, shape index: {}]
  %s1 = inlined_call_operand.vmem [shape: f32[29], index: 1, kind: input, shape index: {}]
  %s2 = inlined_call_operand.<no memory space> [shape: f32[1], index: 2, kind: input, shape index: {}]
  %s3 = inlined_call_operand.hbm [shape: f32[2,1024], index: 3, kind: input, shape index: {}]
  %s4 = inlined_call_operand.hbm [shape: f32[2,1024], index: 4, kind: output, shape index: {}]
  %s5 = sld [smem:[#allocation0]]
  $region38: #{tpu_custom_call.1} parent=0
    _
  %s7 = ssub.s32 1, %s5
  %s8 = scalar_select 0, %s7, %s5
  %9 = sst [smem:[#allocation2]] %s2
  $region1: #{tpu_custom_call.1} parent=0
    #allocation3 [shape = 'u8[512]{0}', space=smem, size = 0x200, scoped, tag = 'input window, operand 0, single buffered']
    #allocation4 [shape = 's32[1]{0}', space=sflag, size = 0x4, scoped, tag = 'scoped memory for tpu_custom_call.1']
    #allocation5 [shape = 's32[1]{0}', space=sflag, size = 0x4, scoped, tag = 'scoped memory for tpu_custom_call.1']
    #allocation6 [shape = 's32[1]{0}', space=sflag, size = 0x4, scoped, tag = 'scoped memory for tpu_custom_call.1']
    #allocation7 [shape = 'u8[512]{0}', space=smem, size = 0x200, scoped, tag = 'input window, operand 1, single buffered']
    #allocation8 [shape = 's32[1]{0}', space=sflag, size = 0x4, scoped, tag = 'scoped memory for tpu_custom_call.1']
    #allocation9 [shape = 'u8[8192]{0}', space=vmem, size = 0x2000, scoped, tag = 'input window, operand 3, single buffered']
    #allocation10 [shape = 'u8[8192]{0}', space=vmem, size = 0x2000, scoped, tag = 'output window, operand 0, single buffered']
    %10 = vsyncpa [#allocation6], 0
    %11 = vsyncpa [#allocation8], 0
    %12 = vsyncpa [#allocation4], 0
    %13 = vsyncpa [#allocation5], 0
    // Predicated region
    $region2: #{tpu_custom_call.1} parent=1 // pred_check
      _
    $region3: #{tpu_custom_call.1} parent=1 // pred_check_branch
      %15 = sbr.rel (0) target = $region5
    $region4: #{tpu_custom_call.1} parent=1 // pred_region
      %s17 = ssub.s32 16, 16
      %18 = vsyncadd [#allocation6], %s17
      %s20 = sshll.u32 %s0, 4
      %s21 = int_to_ptr.vmem [resolvable:$true] %s20
      %23 = dma.vmem_to_smem %s21, 16, [#allocation3], [#allocation6]
    $region5: #{tpu_custom_call.1} parent=1 // pred_fallthru
      _
    // Predicated region
    $region6: #{tpu_custom_call.1} parent=1 // pred_check
      _
    $region7: #{tpu_custom_call.1} parent=1 // pred_check_branch
      %25 = sbr.rel (0) target = $region9
    $region8: #{tpu_custom_call.1} parent=1 // pred_region
      %s27 = ssub.s32 16, 16
      %28 = vsyncadd [#allocation8], %s27
      %s30 = sshll.u32 %s1, 4
      %s31 = int_to_ptr.vmem [resolvable:$true] %s30
      %33 = dma.vmem_to_smem %s31, 16, [#allocation7], [#allocation8]
    $region9: #{tpu_custom_call.1} parent=1 // pred_fallthru
      _
    // Predicated region
    $region10: #{tpu_custom_call.1} parent=1 // pred_check
      _
    $region11: #{tpu_custom_call.1} parent=1 // pred_check_branch
      %35 = sbr.rel (0) target = $region13
    $region12: #{tpu_custom_call.1} parent=1 // pred_region
      _
    $region13: #{tpu_custom_call.1} parent=1 // pred_fallthru
      _
    // Predicated region
    $region14: #{tpu_custom_call.1} parent=1 // pred_check
      _
    $region15: #{tpu_custom_call.1} parent=1 // pred_check_branch
      %37 = sbr.rel (0) target = $region17
    $region16: #{tpu_custom_call.1} parent=1 // pred_region
      %s39 = ssub.s32 256, 256
      %40 = vsyncadd [#allocation4], %s39
      %s42 = sshll.u32 [#allocation9], 4
      %s43 = int_to_ptr.vmem [resolvable:$true] %s42
      %45 = dma.hbm_to_vmem [thread:$0]  %s3, 256, %s43, [#allocation4]
    $region17: #{tpu_custom_call.1} parent=1 // pred_fallthru
      _
    // Predicated region
    $region18: #{tpu_custom_call.1} parent=1 // pred_check
      _
    $region19: #{tpu_custom_call.1} parent=1 // pred_check_branch
      %47 = sbr.rel (0) target = $region21
    $region20: #{tpu_custom_call.1} parent=1 // pred_region
      %48 = dma.done [#allocation6], 16
    $region21: #{tpu_custom_call.1} parent=1 // pred_fallthru
      _
    // Predicated region
    $region22: #{tpu_custom_call.1} parent=1 // pred_check
      _
    $region23: #{tpu_custom_call.1} parent=1 // pred_check_branch
      %50 = sbr.rel (0) target = $region25
    $region24: #{tpu_custom_call.1} parent=1 // pred_region
      %51 = dma.done [#allocation8], 16
    $region25: #{tpu_custom_call.1} parent=1 // pred_fallthru
      _
    // Predicated region
    $region26: #{tpu_custom_call.1} parent=1 // pred_check
      _
    $region27: #{tpu_custom_call.1} parent=1 // pred_check_branch
      %53 = sbr.rel (0) target = $region29
    $region28: #{tpu_custom_call.1} parent=1 // pred_region
      %54 = dma.done [#allocation4], 256
    $region29: #{tpu_custom_call.1} parent=1 // pred_fallthru
      _
    %55 = sfence
    %v56 = vld [vmem:[#allocation9] sm:$0xff]
    %v57 = vld [vmem:[#allocation9 + $0x8] sm:$0xff]
    %s58 = sld [smem:[#allocation2]]
    %v59 = vstv %s58
    %s60 = sld [smem:[#allocation3]]
    %v61 = vstv %s60
    %s62 = sld [smem:[#allocation7]]
    %v63 = vstv %s62
    %v64 = vsub.f32 %v56, %v61
    %v65 = vsub.f32 %v57, %v61
    %v66 = vmax.f32 %v64, 0.0
    %v67 = vmax.f32 %v65, 0.0
    %v68 = vmul.f32 %v63, %v66
    %v69 = vmul.f32 %v63, %v67
    %v70 = vadd.f32 %v59, %v68
    %v71 = vadd.f32 %v59, %v69
    %s72 = sld [smem:[#allocation3 + $0x1]]
    %v73 = vstv %s72
    %s74 = sld [smem:[#allocation7 + $0x1]]
    %v75 = vstv %s74
    %v76 = vsub.f32 %v56, %v73
    %v77 = vsub.f32 %v57, %v73
    %v78 = vmax.f32 %v76, 0.0
    %v79 = vmax.f32 %v77, 0.0
    %v80 = vmul.f32 %v75, %v78
    %v81 = vmul.f32 %v75, %v79
    %v82 = vadd.f32 %v80, 0.0
    %v83 = vadd.f32 %v81, 0.0
    %s84 = sld [smem:[#allocation3 + $0x2]]
    %v85 = vstv %s84
    %s86 = sld [smem:[#allocation7 + $0x2]]
    %v87 = vstv %s86
    %v88 = vsub.f32 %v56, %v85
    %v89 = vsub.f32 %v57, %v85
    %v90 = vmax.f32 %v88, 0.0
    %v91 = vmax.f32 %v89, 0.0
    %v92 = vmul.f32 %v87, %v90
    %v93 = vmul.f32 %v87, %v91
    %v94 = vadd.f32 %v70, %v92
    %v95 = vadd.f32 %v71, %v93
    %s96 = sld [smem:[#allocation3 + $0x3]]
    %v97 = vstv %s96
    %s98 = sld [smem:[#allocation7 + $0x3]]
    %v99 = vstv %s98
    %v100 = vsub.f32 %v56, %v97
    %v101 = vsub.f32 %v57, %v97
    %v102 = vmax.f32 %v100, 0.0
    %v103 = vmax.f32 %v101, 0.0
    %v104 = vmul.f32 %v99, %v102
    %v105 = vmul.f32 %v99, %v103
    %v106 = vadd.f32 %v82, %v104
    %v107 = vadd.f32 %v83, %v105
    %s108 = sld [smem:[#allocation3 + $0x4]]
    %v109 = vstv %s108
    %s110 = sld [smem:[#allocation7 + $0x4]]
    %v111 = vstv %s110
    %v112 = vsub.f32 %v56, %v109
    %v113 = vsub.f32 %v57, %v109
    %v114 = vmax.f32 %v112, 0.0
    %v115 = vmax.f32 %v113, 0.0
    %v116 = vmul.f32 %v111, %v114
    %v117 = vmul.f32 %v111, %v115
    %v118 = vadd.f32 %v94, %v116
    %v119 = vadd.f32 %v95, %v117
    %s120 = sld [smem:[#allocation3 + $0x5]]
    %v121 = vstv %s120
    %s122 = sld [smem:[#allocation7 + $0x5]]
    %v123 = vstv %s122
    %v124 = vsub.f32 %v56, %v121
    %v125 = vsub.f32 %v57, %v121
    %v126 = vmax.f32 %v124, 0.0
    %v127 = vmax.f32 %v125, 0.0
    %v128 = vmul.f32 %v123, %v126
    %v129 = vmul.f32 %v123, %v127
    %v130 = vadd.f32 %v106, %v128
    %v131 = vadd.f32 %v107, %v129
    %s132 = sld [smem:[#allocation3 + $0x6]]
    %v133 = vstv %s132
    %s134 = sld [smem:[#allocation7 + $0x6]]
    %v135 = vstv %s134
    %v136 = vsub.f32 %v56, %v133
    %v137 = vsub.f32 %v57, %v133
    %v138 = vmax.f32 %v136, 0.0
    %v139 = vmax.f32 %v137, 0.0
    %v140 = vmul.f32 %v135, %v138
    %v141 = vmul.f32 %v135, %v139
    %v142 = vadd.f32 %v118, %v140
    %v143 = vadd.f32 %v119, %v141
    %s144 = sld [smem:[#allocation3 + $0x7]]
    %v145 = vstv %s144
    %s146 = sld [smem:[#allocation7 + $0x7]]
    %v147 = vstv %s146
    %v148 = vsub.f32 %v56, %v145
    %v149 = vsub.f32 %v57, %v145
    %v150 = vmax.f32 %v148, 0.0
    %v151 = vmax.f32 %v149, 0.0
    %v152 = vmul.f32 %v147, %v150
    %v153 = vmul.f32 %v147, %v151
    %v154 = vadd.f32 %v130, %v152
    %v155 = vadd.f32 %v131, %v153
    %s156 = sld [smem:[#allocation3 + $0x8]]
    %v157 = vstv %s156
    %s158 = sld [smem:[#allocation7 + $0x8]]
    %v159 = vstv %s158
    %v160 = vsub.f32 %v56, %v157
    %v161 = vsub.f32 %v57, %v157
    %v162 = vmax.f32 %v160, 0.0
    %v163 = vmax.f32 %v161, 0.0
    %v164 = vmul.f32 %v159, %v162
    %v165 = vmul.f32 %v159, %v163
    %v166 = vadd.f32 %v142, %v164
    %v167 = vadd.f32 %v143, %v165
    %s168 = sld [smem:[#allocation3 + $0x9]]
    %v169 = vstv %s168
    %s170 = sld [smem:[#allocation7 + $0x9]]
    %v171 = vstv %s170
    %v172 = vsub.f32 %v56, %v169
    %v173 = vsub.f32 %v57, %v169
    %v174 = vmax.f32 %v172, 0.0
    %v175 = vmax.f32 %v173, 0.0
    %v176 = vmul.f32 %v171, %v174
    %v177 = vmul.f32 %v171, %v175
    %v178 = vadd.f32 %v154, %v176
    %v179 = vadd.f32 %v155, %v177
    %s180 = sld [smem:[#allocation3 + $0xa]]
    %v181 = vstv %s180
    %s182 = sld [smem:[#allocation7 + $0xa]]
    %v183 = vstv %s182
    %v184 = vsub.f32 %v56, %v181
    %v185 = vsub.f32 %v57, %v181
    %v186 = vmax.f32 %v184, 0.0
    %v187 = vmax.f32 %v185, 0.0
    %v188 = vmul.f32 %v183, %v186
    %v189 = vmul.f32 %v183, %v187
    %v190 = vadd.f32 %v166, %v188
    %v191 = vadd.f32 %v167, %v189
    %s192 = sld [smem:[#allocation3 + $0xb]]
    %v193 = vstv %s192
    %s194 = sld [smem:[#allocation7 + $0xb]]
    %v195 = vstv %s194
    %v196 = vsub.f32 %v56, %v193
    %v197 = vsub.f32 %v57, %v193
    %v198 = vmax.f32 %v196, 0.0
    %v199 = vmax.f32 %v197, 0.0
    %v200 = vmul.f32 %v195, %v198
    %v201 = vmul.f32 %v195, %v199
    %v202 = vadd.f32 %v178, %v200
    %v203 = vadd.f32 %v179, %v201
    %s204 = sld [smem:[#allocation3 + $0xc]]
    %v205 = vstv %s204
    %s206 = sld [smem:[#allocation7 + $0xc]]
    %v207 = vstv %s206
    %v208 = vsub.f32 %v56, %v205
    %v209 = vsub.f32 %v57, %v205
    %v210 = vmax.f32 %v208, 0.0
    %v211 = vmax.f32 %v209, 0.0
    %v212 = vmul.f32 %v207, %v210
    %v213 = vmul.f32 %v207, %v211
    %v214 = vadd.f32 %v190, %v212
    %v215 = vadd.f32 %v191, %v213
    %s216 = sld [smem:[#allocation3 + $0xd]]
    %v217 = vstv %s216
    %s218 = sld [smem:[#allocation7 + $0xd]]
    %v219 = vstv %s218
    %v220 = vsub.f32 %v56, %v217
    %v221 = vsub.f32 %v57, %v217
    %v222 = vmax.f32 %v220, 0.0
    %v223 = vmax.f32 %v221, 0.0
    %v224 = vmul.f32 %v219, %v222
    %v225 = vmul.f32 %v219, %v223
    %v226 = vadd.f32 %v202, %v224
    %v227 = vadd.f32 %v203, %v225
    %s228 = sld [smem:[#allocation3 + $0xe]]
    %v229 = vstv %s228
    %s230 = sld [smem:[#allocation7 + $0xe]]
    %v231 = vstv %s230
    %v232 = vsub.f32 %v56, %v229
    %v233 = vsub.f32 %v57, %v229
    %v234 = vmax.f32 %v232, 0.0
    %v235 = vmax.f32 %v233, 0.0
    %v236 = vmul.f32 %v231, %v234
    %v237 = vmul.f32 %v231, %v235
    %v238 = vadd.f32 %v214, %v236
    %v239 = vadd.f32 %v215, %v237
    %s240 = sld [smem:[#allocation3 + $0xf]]
    %v241 = vstv %s240
    %s242 = sld [smem:[#allocation7 + $0xf]]
    %v243 = vstv %s242
    %v244 = vsub.f32 %v56, %v241
    %v245 = vsub.f32 %v57, %v241
    %v246 = vmax.f32 %v244, 0.0
    %v247 = vmax.f32 %v245, 0.0
    %v248 = vmul.f32 %v243, %v246
    %v249 = vmul.f32 %v243, %v247
    %v250 = vadd.f32 %v226, %v248
    %v251 = vadd.f32 %v227, %v249
    %s252 = sld [smem:[#allocation3 + $0x10]]
    %v253 = vstv %s252
    %s254 = sld [smem:[#allocation7 + $0x10]]
    %v255 = vstv %s254
    %v256 = vsub.f32 %v56, %v253
    %v257 = vsub.f32 %v57, %v253
    %v258 = vmax.f32 %v256, 0.0
    %v259 = vmax.f32 %v257, 0.0
    %v260 = vmul.f32 %v255, %v258
    %v261 = vmul.f32 %v255, %v259
    %v262 = vadd.f32 %v238, %v260
    %v263 = vadd.f32 %v239, %v261
    %s264 = sld [smem:[#allocation3 + $0x11]]
    %v265 = vstv %s264
    %s266 = sld [smem:[#allocation7 + $0x11]]
    %v267 = vstv %s266
    %v268 = vsub.f32 %v56, %v265
    %v269 = vsub.f32 %v57, %v265
    %v270 = vmax.f32 %v268, 0.0
    %v271 = vmax.f32 %v269, 0.0
    %v272 = vmul.f32 %v267, %v270
    %v273 = vmul.f32 %v267, %v271
    %v274 = vadd.f32 %v250, %v272
    %v275 = vadd.f32 %v251, %v273
    %s276 = sld [smem:[#allocation3 + $0x12]]
    %v277 = vstv %s276
    %s278 = sld [smem:[#allocation7 + $0x12]]
    %v279 = vstv %s278
    %v280 = vsub.f32 %v56, %v277
    %v281 = vsub.f32 %v57, %v277
    %v282 = vmax.f32 %v280, 0.0
    %v283 = vmax.f32 %v281, 0.0
    %v284 = vmul.f32 %v279, %v282
    %v285 = vmul.f32 %v279, %v283
    %v286 = vadd.f32 %v262, %v284
    %v287 = vadd.f32 %v263, %v285
    %s288 = sld [smem:[#allocation3 + $0x13]]
    %v289 = vstv %s288
    %s290 = sld [smem:[#allocation7 + $0x13]]
    %v291 = vstv %s290
    %v292 = vsub.f32 %v56, %v289
    %v293 = vsub.f32 %v57, %v289
    %v294 = vmax.f32 %v292, 0.0
    %v295 = vmax.f32 %v293, 0.0
    %v296 = vmul.f32 %v291, %v294
    %v297 = vmul.f32 %v291, %v295
    %v298 = vadd.f32 %v274, %v296
    %v299 = vadd.f32 %v275, %v297
    %s300 = sld [smem:[#allocation3 + $0x14]]
    %v301 = vstv %s300
    %s302 = sld [smem:[#allocation7 + $0x14]]
    %v303 = vstv %s302
    %v304 = vsub.f32 %v56, %v301
    %v305 = vsub.f32 %v57, %v301
    %v306 = vmax.f32 %v304, 0.0
    %v307 = vmax.f32 %v305, 0.0
    %v308 = vmul.f32 %v303, %v306
    %v309 = vmul.f32 %v303, %v307
    %v310 = vadd.f32 %v286, %v308
    %v311 = vadd.f32 %v287, %v309
    %s312 = sld [smem:[#allocation3 + $0x15]]
    %v313 = vstv %s312
    %s314 = sld [smem:[#allocation7 + $0x15]]
    %v315 = vstv %s314
    %v316 = vsub.f32 %v56, %v313
    %v317 = vsub.f32 %v57, %v313
    %v318 = vmax.f32 %v316, 0.0
    %v319 = vmax.f32 %v317, 0.0
    %v320 = vmul.f32 %v315, %v318
    %v321 = vmul.f32 %v315, %v319
    %v322 = vadd.f32 %v298, %v320
    %v323 = vadd.f32 %v299, %v321
    %s324 = sld [smem:[#allocation3 + $0x16]]
    %v325 = vstv %s324
    %s326 = sld [smem:[#allocation7 + $0x16]]
    %v327 = vstv %s326
    %v328 = vsub.f32 %v56, %v325
    %v329 = vsub.f32 %v57, %v325
    %v330 = vmax.f32 %v328, 0.0
    %v331 = vmax.f32 %v329, 0.0
    %v332 = vmul.f32 %v327, %v330
    %v333 = vmul.f32 %v327, %v331
    %v334 = vadd.f32 %v310, %v332
    %v335 = vadd.f32 %v311, %v333
    %s336 = sld [smem:[#allocation3 + $0x17]]
    %v337 = vstv %s336
    %s338 = sld [smem:[#allocation7 + $0x17]]
    %v339 = vstv %s338
    %v340 = vsub.f32 %v56, %v337
    %v341 = vsub.f32 %v57, %v337
    %v342 = vmax.f32 %v340, 0.0
    %v343 = vmax.f32 %v341, 0.0
    %v344 = vmul.f32 %v339, %v342
    %v345 = vmul.f32 %v339, %v343
    %v346 = vadd.f32 %v322, %v344
    %v347 = vadd.f32 %v323, %v345
    %s348 = sld [smem:[#allocation3 + $0x18]]
    %v349 = vstv %s348
    %s350 = sld [smem:[#allocation7 + $0x18]]
    %v351 = vstv %s350
    %v352 = vsub.f32 %v56, %v349
    %v353 = vsub.f32 %v57, %v349
    %v354 = vmax.f32 %v352, 0.0
    %v355 = vmax.f32 %v353, 0.0
    %v356 = vmul.f32 %v351, %v354
    %v357 = vmul.f32 %v351, %v355
    %v358 = vadd.f32 %v334, %v356
    %v359 = vadd.f32 %v335, %v357
    %s360 = sld [smem:[#allocation3 + $0x19]]
    %v361 = vstv %s360
    %s362 = sld [smem:[#allocation7 + $0x19]]
    %v363 = vstv %s362
    %v364 = vsub.f32 %v56, %v361
    %v365 = vsub.f32 %v57, %v361
    %v366 = vmax.f32 %v364, 0.0
    %v367 = vmax.f32 %v365, 0.0
    %v368 = vmul.f32 %v363, %v366
    %v369 = vmul.f32 %v363, %v367
    %v370 = vadd.f32 %v346, %v368
    %v371 = vadd.f32 %v347, %v369
    %s372 = sld [smem:[#allocation3 + $0x1a]]
    %v373 = vstv %s372
    %s374 = sld [smem:[#allocation7 + $0x1a]]
    %v375 = vstv %s374
    %v376 = vsub.f32 %v56, %v373
    %v377 = vsub.f32 %v57, %v373
    %v378 = vmax.f32 %v376, 0.0
    %v379 = vmax.f32 %v377, 0.0
    %v380 = vmul.f32 %v375, %v378
    %v381 = vmul.f32 %v375, %v379
    %v382 = vadd.f32 %v358, %v380
    %v383 = vadd.f32 %v359, %v381
    %s384 = sld [smem:[#allocation3 + $0x1b]]
    %v385 = vstv %s384
    %s386 = sld [smem:[#allocation7 + $0x1b]]
    %v387 = vstv %s386
    %v388 = vsub.f32 %v56, %v385
    %v389 = vsub.f32 %v57, %v385
    %v390 = vmax.f32 %v388, 0.0
    %v391 = vmax.f32 %v389, 0.0
    %v392 = vmul.f32 %v387, %v390
    %v393 = vmul.f32 %v387, %v391
    %v394 = vadd.f32 %v370, %v392
    %v395 = vadd.f32 %v371, %v393
    %s396 = sld [smem:[#allocation3 + $0x1c]]
    %v397 = vstv %s396
    %s398 = sld [smem:[#allocation7 + $0x1c]]
    %v399 = vstv %s398
    %v400 = vsub.f32 %v56, %v397
    %v401 = vsub.f32 %v57, %v397
    %v402 = vmax.f32 %v400, 0.0
    %v403 = vmax.f32 %v401, 0.0
    %v404 = vmul.f32 %v399, %v402
    %v405 = vmul.f32 %v399, %v403
    %v406 = vadd.f32 %v382, %v404
    %v407 = vadd.f32 %v383, %v405
    %v408 = vadd.f32 %v406, %v394
    %v409 = vadd.f32 %v407, %v395
    %410 = vst [vmem:[#allocation10] sm:$0xff] %v408
    %411 = vst [vmem:[#allocation10 + $0x8] sm:$0xff] %v409
    // Predicated region
    $region30: #{tpu_custom_call.1} parent=1 // pred_check
      _
    $region31: #{tpu_custom_call.1} parent=1 // pred_check_branch
      %413 = sbr.rel (0) target = $region33
    $region32: #{tpu_custom_call.1} parent=1 // pred_region
      %s415 = ssub.s32 256, 256
      %416 = vsyncadd [#allocation5], %s415
      %s418 = sshll.u32 [#allocation10], 4
      %s419 = int_to_ptr.vmem [resolvable:$true] %s418
      %421 = dma.vmem_to_hbm [thread:$0]  %s419, 256, %s4, [#allocation5]
    $region33: #{tpu_custom_call.1} parent=1 // pred_fallthru
      _
    // Predicated region
    $region34: #{tpu_custom_call.1} parent=1 // pred_check
      _
    $region35: #{tpu_custom_call.1} parent=1 // pred_check_branch
      %423 = sbr.rel (0) target = $region37
    $region36: #{tpu_custom_call.1} parent=1 // pred_region
      %424 = dma.done [#allocation5], 256
    $region37: #{tpu_custom_call.1} parent=1 // pred_fallthru
      _
    %425 = vsyncpa [#allocation4], 1
    %426 = vsyncpa [#allocation5], 1
    %427 = vsyncpa [#allocation6], 1
    %428 = vsyncpa [#allocation8], 1

</llo_original>
